<compile_context>
chip_gen: v7x
topology: tpu7x:2x2x1
jax: 0.10.0
libtpu: 0.0.40
codegen_flags: <defaults>
</compile_context>

<pallas_src>
import functools

import jax
import jax.numpy as jnp
from jax.experimental import pallas as pl
from jax.experimental.pallas import tpu as pltpu


def _int_pow(x, n):
    """x**n for a static non-negative integer n via VPU multiplies."""
    if n == 0:
        return jnp.ones_like(x)
    result = None
    base = x
    while n:
        if n & 1:
            result = base if result is None else result * base
        n >>= 1
        if n:
            base = base * base
    return result


def _asl_kernel(x_ref, y_ref, out_ref, acc_ref, *,
                gamma_neg, gamma_pos, clip, eps, scale,
                binary_labels, int_gammas, batch, needs_mask):
    i = pl.program_id(1)

    @pl.when(i == 0)
    def _():
        acc_ref[...] = jnp.zeros_like(acc_ref)

    x = x_ref[...].astype(jnp.float32)

    # sigmoid / asymmetric clipping
    xs_pos = jax.nn.sigmoid(x)
    xs_neg = 1.0 - xs_pos
    if clip is not None and clip > 0:
        xs_neg = jnp.minimum(xs_neg + clip, 1.0)

    use_focal = (gamma_neg > 0) or (gamma_pos > 0)

    if binary_labels:
        # y is exactly {0,1}: a single select + a single log replaces
        # y*log(p) + (1-y)*log(q); the label test runs on the native dtype
        # (no full-tile convert) and the focal weight uses integer powers
        # (pure VPU) when the gammas are small non-negative integers.
        y_raw = y_ref[...]
        if jnp.issubdtype(y_raw.dtype, jnp.bool_):
            y_pos = y_raw
        elif jnp.issubdtype(y_raw.dtype, jnp.integer):
            y_pos = y_raw != 0
        else:
            y_pos = y_raw >= jnp.asarray(0.5, dtype=y_raw.dtype)
        p = jnp.where(y_pos, xs_pos, xs_neg)
        loss = jnp.log(jnp.maximum(p, eps))
        if use_focal:
            one_m_pt = 1.0 - p            # pt == p for binary labels
            if int_gammas:
                w = jnp.where(y_pos,
                              _int_pow(one_m_pt, int(gamma_pos)),
                              _int_pow(one_m_pt, int(gamma_neg)))
            else:
                g = jnp.where(y_pos, gamma_pos, gamma_neg)
                w = jnp.exp(g * jnp.log(jnp.maximum(one_m_pt, 1e-38)))
            loss = loss * w
    else:
        # Generic (soft-label) path — matches the PyTorch expression exactly.
        y = y_ref[...].astype(jnp.float32)
        los_pos = y * jnp.log(jnp.maximum(xs_pos, eps))
        los_neg = (1.0 - y) * jnp.log(jnp.maximum(xs_neg, eps))
        loss = los_pos + los_neg
        if use_focal:
            pt = xs_pos * y + xs_neg * (1.0 - y)
            g = gamma_pos * y + gamma_neg * (1.0 - y)
            loss = loss * jnp.exp(g * jnp.log(jnp.maximum(1.0 - pt, 1e-38)))

    if needs_mask:
        # Tail block: zero out padded rows before accumulating.
        row_tile = loss.shape[0]
        block = pl.program_id(0) * pl.num_programs(1) + i
        rows_left = batch - block * row_tile
        row_ids = jax.lax.broadcasted_iota(jnp.int32, loss.shape, 0)
        loss = jnp.where(row_ids < rows_left, loss, 0.0)

    # Fold the tile into the small (acc_rows, C) accumulator: layout-preserving
    # reshape over the sublane axis + pure VPU adds every grid step.
    acc_rows = acc_ref.shape[0]
    groups = loss.shape[0] // acc_rows
    if groups <= 1:
        partial = loss
    else:
        partial = jnp.sum(loss.reshape(groups, acc_rows, loss.shape[1]), axis=0)
    acc_ref[...] += partial

    # Single cross-lane reduction + per-core scalar write only in the epilogue.
    @pl.when(i == pl.num_programs(1) - 1)
    def _():
        total = jnp.sum(acc_ref[...])
        out_ref[...] = jnp.reshape(-total * scale, (1, 1, 1))


def _vmem_capacity_bytes():
    """Per-TensorCore VMEM capacity; conservative (v7x) fallback."""
    try:
        info = pltpu.get_tpu_info()
        for name in ("vmem_capacity_bytes", "vmem_bytes", "vmem_capacity"):
            v = getattr(info, name, None)
            if v:
                return int(v)
    except Exception:
        pass
    return 64 << 20


def asymmetric_loss(x, y, *, gamma_neg=4, gamma_pos=1, clip=0.05, eps=1e-8,
                    reduction="mean", binary_labels=None, row_tile=None,
                    num_splits=None):
    """Pallas implementation of AsymmetricLoss.forward.

    binary_labels: None -> auto (fast path only for bool/integer label dtypes);
    True forces the fast path (labels must be exactly {0,1}); False uses the
    generic soft-label expression.
    """
    assert x.shape == y.shape
    if x.ndim != 2:
        x = x.reshape(-1, x.shape[-1])
        y = y.reshape(-1, y.shape[-1])
    B, C = x.shape

    if binary_labels is None:
        binary_labels = (jnp.issubdtype(y.dtype, jnp.bool_)
                         or jnp.issubdtype(y.dtype, jnp.integer))

    x_isz = jnp.dtype(x.dtype).itemsize
    y_isz = jnp.dtype(y.dtype).itemsize
    # Sublane granule so packed dtypes (bf16 -> 16, int8/bool -> 32) tile cleanly.
    granule = 8
    for isz in (x_isz, y_isz):
        if isz < 4:
            granule = max(granule, 32 // isz)

    cap = _vmem_capacity_bytes()
    if cap <= (64 << 20):           # v7x: 64 MiB physical VMEM per TC
        step_budget, vmem_limit = 6 << 20, 30 << 20
    else:                           # v5e / v6e: 128 MiB physical VMEM
        step_budget, vmem_limit = 8 << 20, 64 << 20

    bytes_per_row = C * (x_isz + y_isz)
    if row_tile is None:
        budget_rows = max(granule, step_budget // max(bytes_per_row, 1))
        row_tile = min(int(budget_rows), B)
        if row_tile >= granule:
            row_tile = (row_tile // granule) * granule
    row_tile = max(1, min(int(row_tile), B))

    total_blocks = pl.cdiv(B, row_tile)
    if num_splits is None:
        # Leading "parallel" axis -> both v7x TensorCores; free on 1-TC chips.
        num_splits = 2 if (total_blocks >= 2 and total_blocks % 2 == 0) else 1
    assert total_blocks % num_splits == 0, "num_splits must divide the block count"
    bps = total_blocks // num_splits
    needs_mask = (B % row_tile) != 0

    acc_rows = 8 if row_tile % 8 == 0 else row_tile

    # torch module: 'mean' -> -mean, anything else -> -sum.
    scale = 1.0 / (B * C) if reduction == "mean" else 1.0
    int_gammas = (float(gamma_pos).is_integer() and float(gamma_neg).is_integer()
                  and gamma_pos >= 0 and gamma_neg >= 0
                  and max(gamma_pos, gamma_neg) <= 64)

    kernel = functools.partial(
        _asl_kernel,
        gamma_neg=float(gamma_neg),
        gamma_pos=float(gamma_pos),
        clip=clip,
        eps=float(eps),
        scale=float(scale),
        binary_labels=bool(binary_labels),
        int_gammas=bool(int_gammas),
        batch=int(B),
        needs_mask=bool(needs_mask),
    )

    out = pl.pallas_call(
        kernel,
        out_shape=jax.ShapeDtypeStruct((num_splits, 1, 1), jnp.float32),
        grid_spec=pltpu.PrefetchScalarGridSpec(
            num_scalar_prefetch=0,
            grid=(num_splits, bps),
            in_specs=[
                pl.BlockSpec((row_tile, C), lambda c, i: (c * bps + i, 0)),
                pl.BlockSpec((row_tile, C), lambda c, i: (c * bps + i, 0)),
            ],
            out_specs=pl.BlockSpec((1, 1, 1), lambda c, i: (c, 0, 0)),
            scratch_shapes=[pltpu.VMEM((acc_rows, C), jnp.float32)],
        ),
        compiler_params=pltpu.CompilerParams(
            dimension_semantics=("parallel", "arbitrary"),
            vmem_limit_bytes=int(vmem_limit)),
    )(x, y)  # no wrapper-side casts: kernel handles native dtypes
    return jnp.sum(out)


def _reference(x, y, gamma_neg=4, gamma_pos=1, clip=0.05, eps=1e-8):
    x = x.astype(jnp.float32)
    y = y.astype(jnp.float32)
    xs_pos = jax.nn.sigmoid(x)
    xs_neg = jnp.minimum(1.0 - xs_pos + clip, 1.0)
    los_pos = y * jnp.log(jnp.maximum(xs_pos, eps))
    los_neg = (1.0 - y) * jnp.log(jnp.maximum(xs_neg, eps))
    loss = los_pos + los_neg
    pt = xs_pos * y + xs_neg * (1.0 - y)
    g = gamma_pos * y + gamma_neg * (1.0 - y)
    loss = loss * jnp.power(1.0 - pt, g)
    return -jnp.mean(loss)


if __name__ == "__main__":
    key = jax.random.PRNGKey(0)
    kx, ky = jax.random.split(key)
    B, C = 64, 256  # (batch, num_classes) — small test shape
    x = jax.random.normal(kx, (B, C), dtype=jnp.float32) * 2.0
    y = jax.random.bernoulli(ky, p=0.3, shape=(B, C)).astype(jnp.float32)

    ref = _reference(x, y)

    # Auto tile; float labels -> generic (soft-label-safe) path.
    loss_auto = asymmetric_loss(x, y)
    # Forced binary fast path with float {0,1} labels.
    loss_bin = asymmetric_loss(x, y, binary_labels=True)
    # Small tile -> multi-step grid with the 2-way "parallel" split.
    loss_tiled = asymmetric_loss(x, y, row_tile=8)
    # bf16 logits + int8 labels: native-dtype streaming, auto binary path.
    x_bf = x.astype(jnp.bfloat16)
    y_i8 = y.astype(jnp.int8)
    loss_bf = asymmetric_loss(x_bf, y_i8)
    ref_bf = _reference(x_bf.astype(jnp.float32), y)
    # Ragged batch (tail-block masking).
    x60, y60 = x[:60], y[:60]
    loss_mask = asymmetric_loss(x60, y60, row_tile=16)
    ref_mask = _reference(x60, y60)

    jax.block_until_ready((loss_auto, loss_bin, loss_tiled, loss_bf, loss_mask))

    for v in (loss_auto, loss_bin, loss_tiled):
        assert jnp.allclose(v, ref, rtol=5e-5, atol=1e-6), (v, ref)
    assert jnp.allclose(loss_bf, ref_bf, rtol=5e-5, atol=1e-6), (loss_bf, ref_bf)
    assert jnp.allclose(loss_mask, ref_mask, rtol=5e-5, atol=1e-6), (loss_mask, ref_mask)
    print("KERNEL_OK")
</pallas_src>

<mosaic_0001>
module attributes {stable_mosaic.version = 11 : i64} {
  func.func @_asl_kernel(%arg0: i32, %arg1: i32, %arg2: memref<64x256xf32, #tpu.memory_space<vmem>>, %arg3: memref<64x256xf32, #tpu.memory_space<vmem>>, %arg4: memref<1x1x1xf32, #tpu.memory_space<vmem>>, %arg5: memref<8x256xf32, #tpu.memory_space<vmem>>) attributes {dimension_semantics = [#tpu.dimension_semantics<parallel>, #tpu.dimension_semantics<arbitrary>], iteration_bounds = array<i64: 1, 1>, scalar_prefetch = 0 : i64, scratch_operands = 1 : i64, tpu.core_type = #tpu.core_type<tc>, window_params = [{transform_indices = @transform_0, window_bounds = array<i64: 64, 256>}, {transform_indices = @transform_1, window_bounds = array<i64: 64, 256>}, {transform_indices = @transform_2, window_bounds = array<i64: 1, 1, 1>}]} {
    %c0_i32 = arith.constant 0 : i32
    %0 = arith.cmpi eq, %arg1, %c0_i32 : i32
    %1 = arith.extui %0 : i1 to i32
    %c0_i32_0 = arith.constant 0 : i32
    %2 = arith.cmpi ne, %1, %c0_i32_0 : i32
    scf.if %2 {
      %cst_23 = arith.constant 0.000000e+00 : f32
      %55 = vector.broadcast %cst_23 : f32 to vector<8x256xf32>
      %c0_24 = arith.constant 0 : index
      %c0_25 = arith.constant 0 : index
      %56 = vector.load %arg5[%c0_24, %c0_25] : memref<8x256xf32, #tpu.memory_space<vmem>>, vector<8x256xf32>
      tpu.vector_store %arg5[%c0_24, %c0_25], %55 {strides = array<i32>} : memref<8x256xf32, #tpu.memory_space<vmem>>, vector<8x256xf32>,
    } else {
    }
    %c0 = arith.constant 0 : index
    %c0_1 = arith.constant 0 : index
    %3 = vector.load %arg2[%c0, %c0_1] : memref<64x256xf32, #tpu.memory_space<vmem>>, vector<64x256xf32>
    %4 = arith.negf %3 : vector<64x256xf32>
    %5 = math.exp %4 : vector<64x256xf32>
    %cst = arith.constant 1.000000e+00 : f32
    %6 = vector.broadcast %cst : f32 to vector<64x256xf32>
    %7 = arith.addf %6, %5 : vector<64x256xf32>
    %8 = arith.divf %6, %7 : vector<64x256xf32>
    %cst_2 = arith.constant 1.000000e+00 : f32
    %9 = vector.broadcast %cst_2 : f32 to vector<64x256xf32>
    %10 = arith.subf %9, %8 : vector<64x256xf32>
    %cst_3 = arith.constant 5.000000e-02 : f32
    %11 = vector.broadcast %cst_3 : f32 to vector<64x256xf32>
    %12 = arith.addf %10, %11 : vector<64x256xf32>
    %cst_4 = arith.constant 1.000000e+00 : f32
    %13 = vector.broadcast %cst_4 : f32 to vector<64x256xf32>
    %14 = arith.minimumf %12, %13 : vector<64x256xf32>
    %c0_5 = arith.constant 0 : index
    %c0_6 = arith.constant 0 : index
    %15 = vector.load %arg3[%c0_5, %c0_6] : memref<64x256xf32, #tpu.memory_space<vmem>>, vector<64x256xf32>
    %cst_7 = arith.constant 9.99999993E-9 : f32
    %16 = vector.broadcast %cst_7 : f32 to vector<64x256xf32>
    %17 = arith.maximumf %8, %16 : vector<64x256xf32>
    %18 = math.log %17 : vector<64x256xf32>
    %19 = arith.mulf %15, %18 : vector<64x256xf32>
    %cst_8 = arith.constant 1.000000e+00 : f32
    %20 = vector.broadcast %cst_8 : f32 to vector<64x256xf32>
    %21 = arith.subf %20, %15 : vector<64x256xf32>
    %cst_9 = arith.constant 9.99999993E-9 : f32
    %22 = vector.broadcast %cst_9 : f32 to vector<64x256xf32>
    %23 = arith.maximumf %14, %22 : vector<64x256xf32>
    %24 = math.log %23 : vector<64x256xf32>
    %25 = arith.mulf %21, %24 : vector<64x256xf32>
    %26 = arith.addf %19, %25 : vector<64x256xf32>
    %27 = arith.mulf %8, %15 : vector<64x256xf32>
    %cst_10 = arith.constant 1.000000e+00 : f32
    %28 = vector.broadcast %cst_10 : f32 to vector<64x256xf32>
    %29 = arith.subf %28, %15 : vector<64x256xf32>
    %30 = arith.mulf %14, %29 : vector<64x256xf32>
    %31 = arith.addf %27, %30 : vector<64x256xf32>
    %cst_11 = arith.constant 1.000000e+00 : f32
    %32 = vector.broadcast %cst_11 : f32 to vector<64x256xf32>
    %33 = arith.mulf %32, %15 : vector<64x256xf32>
    %cst_12 = arith.constant 1.000000e+00 : f32
    %34 = vector.broadcast %cst_12 : f32 to vector<64x256xf32>
    %35 = arith.subf %34, %15 : vector<64x256xf32>
    %cst_13 = arith.constant 4.000000e+00 : f32
    %36 = vector.broadcast %cst_13 : f32 to vector<64x256xf32>
    %37 = arith.mulf %36, %35 : vector<64x256xf32>
    %38 = arith.addf %33, %37 : vector<64x256xf32>
    %cst_14 = arith.constant 1.000000e+00 : f32
    %39 = vector.broadcast %cst_14 : f32 to vector<64x256xf32>
    %40 = arith.subf %39, %31 : vector<64x256xf32>
    %cst_15 = arith.constant 9.99999935E-39 : f32
    %41 = vector.broadcast %cst_15 : f32 to vector<64x256xf32>
    %42 = arith.maximumf %40, %41 : vector<64x256xf32>
    %43 = math.log %42 : vector<64x256xf32>
    %44 = arith.mulf %38, %43 : vector<64x256xf32>
    %45 = math.exp %44 : vector<64x256xf32>
    %46 = arith.mulf %26, %45 : vector<64x256xf32>
    %47 = vector.shape_cast %46 : vector<64x256xf32> to vector<8x8x256xf32>
    %cst_16 = arith.constant dense<0.000000e+00> : vector<8x256xf32>
    %48 = vector.multi_reduction <add>, %47, %cst_16 [0] : vector<8x8x256xf32> to vector<8x256xf32>
    %c0_17 = arith.constant 0 : index
    %c0_18 = arith.constant 0 : index
    %49 = vector.load %arg5[%c0_17, %c0_18] : memref<8x256xf32, #tpu.memory_space<vmem>>, vector<8x256xf32>
    %50 = arith.addf %49, %48 : vector<8x256xf32>
    %c0_19 = arith.constant 0 : index
    %c0_20 = arith.constant 0 : index
    %51 = vector.load %arg5[%c0_19, %c0_20] : memref<8x256xf32, #tpu.memory_space<vmem>>, vector<8x256xf32>
    tpu.vector_store %arg5[%c0_19, %c0_20], %50 {strides = array<i32>} : memref<8x256xf32, #tpu.memory_space<vmem>>, vector<8x256xf32>,
    %c0_i32_21 = arith.constant 0 : i32
    %52 = arith.cmpi eq, %arg1, %c0_i32_21 : i32
    %53 = arith.extui %52 : i1 to i32
    %c0_i32_22 = arith.constant 0 : i32
    %54 = arith.cmpi ne, %53, %c0_i32_22 : i32
    scf.if %54 {
      %c0_23 = arith.constant 0 : index
      %c0_24 = arith.constant 0 : index
      %55 = vector.load %arg5[%c0_23, %c0_24] : memref<8x256xf32, #tpu.memory_space<vmem>>, vector<8x256xf32>
      %56 = vector.shape_cast %55 : vector<8x256xf32> to vector<1x8x256xf32>
      %cst_25 = arith.constant dense<0.000000e+00> : vector<1xf32>
      %57 = vector.multi_reduction <add>, %56, %cst_25 [1, 2] : vector<1x8x256xf32> to vector<1xf32>
      %58 = vector.shape_cast %57 : vector<1xf32> to vector<1x1x1xf32>
      %59 = vector.extract %58[0, 0, 0] : f32 from vector<1x1x1xf32>
      %cst_26 = arith.constant 0.000000e+00 : f32
      %60 = arith.subf %cst_26, %59 : f32
      %cst_27 = arith.constant 6.10351563E-5 : f32
      %61 = arith.mulf %60, %cst_27 : f32
      %62 = vector.broadcast %61 : f32 to vector<1x1x1xf32>
      %c0_28 = arith.constant 0 : index
      %c0_29 = arith.constant 0 : index
      %c0_30 = arith.constant 0 : index
      %63 = vector.load %arg4[%c0_28, %c0_29, %c0_30] : memref<1x1x1xf32, #tpu.memory_space<vmem>>, vector<1x1x1xf32>
      tpu.vector_store %arg4[%c0_28, %c0_29, %c0_30], %62 {strides = array<i32>} : memref<1x1x1xf32, #tpu.memory_space<vmem>>, vector<1x1x1xf32>,
    } else {
    }
    return
  }
  func.func @transform_0(%arg0: i32, %arg1: i32) -> (i32, i32) {
    %c1_i32 = arith.constant 1 : i32
    %0 = arith.muli %arg0, %c1_i32 : i32
    %1 = arith.addi %0, %arg1 : i32
    %c0_i32 = arith.constant 0 : i32
    %c0_i32_0 = arith.constant 0 : i32
    return %1, %c0_i32 : i32, i32
  }
  func.func @transform_1(%arg0: i32, %arg1: i32) -> (i32, i32) {
    %c1_i32 = arith.constant 1 : i32
    %0 = arith.muli %arg0, %c1_i32 : i32
    %1 = arith.addi %0, %arg1 : i32
    %c0_i32 = arith.constant 0 : i32
    %c0_i32_0 = arith.constant 0 : i32
    return %1, %c0_i32 : i32, i32
  }
  func.func @transform_2(%arg0: i32, %arg1: i32) -> (i32, i32, i32) {
    %c0_i32 = arith.constant 0 : i32
    %c0_i32_0 = arith.constant 0 : i32
    %c0_i32_1 = arith.constant 0 : i32
    return %arg0, %c0_i32, %c0_i32_0 : i32, i32, i32
  }
}

</mosaic_0001>

<llo_original>
// kernel: tpu_custom_call.1
$region0: #{tpu_custom_call.1}
  #allocation0 [shape = 'u32[]', space=smem, size = 0x4, offset = 0x4, fixed_abs, tag = 'smem constant byte address 0x4 - core index']
  #allocation1 [shape = 'u32[144,128]{1,0:T(1,128)}', space=vmem, size = 0x12000, scoped, tag = 'internal scratch']
  #allocation2 [shape = 'f32[8,256]{1,0:T(8,128)}', space=vmem, size = 0x2000, scoped, tag = 'scratch operand']
  %s0 = inlined_call_operand.hbm [shape: f32[64,256], index: 0, kind: input, shape index: {}]
  %s1 = inlined_call_operand.hbm [shape: f32[64,256], index: 1, kind: input, shape index: {}]
  %s2 = inlined_call_operand.hbm [shape: f32[1,1,1], index: 2, kind: output, shape index: {}]
  %s3 = sld [smem:[#allocation0]]
  $region34: #{tpu_custom_call.1} parent=0
    _
  %s5 = ssub.s32 1, %s3
  %s6 = scalar_select 0, %s5, %s3
  $region1: #{tpu_custom_call.1} parent=0
    #allocation3 [shape = 'u8[65536]{0}', space=vmem, size = 0x10000, scoped, tag = 'input window, operand 0, single buffered']
    #allocation4 [shape = 's32[1]{0}', space=sflag, size = 0x4, scoped, tag = 'scoped memory for tpu_custom_call.1']
    #allocation5 [shape = 's32[1]{0}', space=sflag, size = 0x4, scoped, tag = 'scoped memory for tpu_custom_call.1']
    #allocation6 [shape = 'u8[65536]{0}', space=vmem, size = 0x10000, scoped, tag = 'input window, operand 1, single buffered']
    #allocation7 [shape = 's32[1]{0}', space=sflag, size = 0x4, scoped, tag = 'scoped memory for tpu_custom_call.1']
    #allocation8 [shape = 'u8[512]{0}', space=vmem, size = 0x400, scoped, tag = 'output window, operand 0, single buffered']
    %7 = vsyncpa [#allocation4], 0
    %8 = vsyncpa [#allocation7], 0
    %9 = vsyncpa [#allocation5], 0
    // Predicated region
    $region2: #{tpu_custom_call.1} parent=1 // pred_check
      _
    $region3: #{tpu_custom_call.1} parent=1 // pred_check_branch
      %11 = sbr.rel (0) target = $region5
    $region4: #{tpu_custom_call.1} parent=1 // pred_region
      %s12 = sadd.s32 0, 0
      %s13 = smul.u32 8, %s12
      %s15 = ssub.s32 2048, 2048
      %16 = vsyncadd [#allocation4], %s15
      %s17 = smul.addr %s13, 2
      %s18 = smul.addr %s17, 128
      %s19 = scalar_lea.hbm %s0, %s18
      %s20 = sshll.u32 [#allocation3], 4
      %s21 = int_to_ptr.vmem [resolvable:$true] %s20
      %26 = dma.hbm_to_vmem [thread:$0]  %s19, 2048, %s21, [#allocation4], 256, 256, 16
    $region5: #{tpu_custom_call.1} parent=1 // pred_fallthru
      _
    // Predicated region
    $region6: #{tpu_custom_call.1} parent=1 // pred_check
      _
    $region7: #{tpu_custom_call.1} parent=1 // pred_check_branch
      %28 = sbr.rel (0) target = $region9
    $region8: #{tpu_custom_call.1} parent=1 // pred_region
      %s29 = sadd.s32 0, 0
      %s30 = smul.u32 8, %s29
      %s32 = ssub.s32 2048, 2048
      %33 = vsyncadd [#allocation7], %s32
      %s34 = smul.addr %s30, 2
      %s35 = smul.addr %s34, 128
      %s36 = scalar_lea.hbm %s1, %s35
      %s37 = sshll.u32 [#allocation6], 4
      %s38 = int_to_ptr.vmem [resolvable:$true] %s37
      %43 = dma.hbm_to_vmem [thread:$0]  %s36, 2048, %s38, [#allocation7], 256, 256, 16
    $region9: #{tpu_custom_call.1} parent=1 // pred_fallthru
      _
    // Predicated region
    $region10: #{tpu_custom_call.1} parent=1 // pred_check
      _
    $region11: #{tpu_custom_call.1} parent=1 // pred_check_branch
      %45 = sbr.rel (0) target = $region13
    $region12: #{tpu_custom_call.1} parent=1 // pred_region
      %46 = dma.done [#allocation4], 2048
    $region13: #{tpu_custom_call.1} parent=1 // pred_fallthru
      _
    // Predicated region
    $region14: #{tpu_custom_call.1} parent=1 // pred_check
      _
    $region15: #{tpu_custom_call.1} parent=1 // pred_check_branch
      %48 = sbr.rel (0) target = $region17
    $region16: #{tpu_custom_call.1} parent=1 // pred_region
      %49 = dma.done [#allocation7], 2048
    $region17: #{tpu_custom_call.1} parent=1 // pred_fallthru
      _
    %s50 = sadd.s32 0, 0
    %s51 = smul.u32 8, %s50
    %s52 = sadd.s32 0, 0
    %s53 = smul.u32 8, %s52
    %p54 = scmp.eq.s32.totalorder 0, 0
    // Predicated region
    $region18: #{tpu_custom_call.1} parent=1 // pred_check
      %p55 = pneg %p54
    $region19: #{tpu_custom_call.1} parent=1 // pred_check_branch
      %57 = sbr.rel (%p55) target = $region21
    $region20: #{tpu_custom_call.1} parent=1 // pred_region
      %58 = vst [vmem:[#allocation2] sm:$0xff] 0.0
      %59 = vst [vmem:[#allocation2 + $0x8] sm:$0xff] 0.0
    $region21: #{tpu_custom_call.1} parent=1 // pred_fallthru
      _
    %v60 = vld [vmem:[#allocation3] sm:$0xff]
    %v61 = vld [vmem:[#allocation3 + $0x8] sm:$0xff]
    %v62 = vld [vmem:[#allocation3 + $0x10] sm:$0xff]
    %v63 = vld [vmem:[#allocation3 + $0x18] sm:$0xff]
    %v64 = vld [vmem:[#allocation3 + $0x20] sm:$0xff]
    %v65 = vld [vmem:[#allocation3 + $0x28] sm:$0xff]
    %v66 = vld [vmem:[#allocation3 + $0x30] sm:$0xff]
    %v67 = vld [vmem:[#allocation3 + $0x38] sm:$0xff]
    %v68 = vld [vmem:[#allocation3 + $0x40] sm:$0xff]
    %v69 = vld [vmem:[#allocation3 + $0x48] sm:$0xff]
    %v70 = vld [vmem:[#allocation3 + $0x50] sm:$0xff]
    %v71 = vld [vmem:[#allocation3 + $0x58] sm:$0xff]
    %v72 = vld [vmem:[#allocation3 + $0x60] sm:$0xff]
    %v73 = vld [vmem:[#allocation3 + $0x68] sm:$0xff]
    %v74 = vld [vmem:[#allocation3 + $0x70] sm:$0xff]
    %v75 = vld [vmem:[#allocation3 + $0x78] sm:$0xff]
    %v76 = vxor.u32 %v60, 2147483648
    %v77 = vxor.u32 %v61, 2147483648
    %v78 = vxor.u32 %v62, 2147483648
    %v79 = vxor.u32 %v63, 2147483648
    %v80 = vxor.u32 %v64, 2147483648
    %v81 = vxor.u32 %v65, 2147483648
    %v82 = vxor.u32 %v66, 2147483648
    %v83 = vxor.u32 %v67, 2147483648
    %v84 = vxor.u32 %v68, 2147483648
    %v85 = vxor.u32 %v69, 2147483648
    %v86 = vxor.u32 %v70, 2147483648
    %v87 = vxor.u32 %v71, 2147483648
    %v88 = vxor.u32 %v72, 2147483648
    %v89 = vxor.u32 %v73, 2147483648
    %v90 = vxor.u32 %v74, 2147483648
    %v91 = vxor.u32 %v75, 2147483648
    %v92 = vmul.f32 %v76, 1.442695
    %v93 = vpow.pop %v92
    %v94 = vmul.f32 %v77, 1.442695
    %v95 = vpow.pop %v94
    %v96 = vmul.f32 %v78, 1.442695
    %v97 = vpow.pop %v96
    %v98 = vmul.f32 %v79, 1.442695
    %v99 = vpow.pop %v98
    %v100 = vmul.f32 %v80, 1.442695
    %v101 = vpow.pop %v100
    %v102 = vmul.f32 %v81, 1.442695
    %v103 = vpow.pop %v102
    %v104 = vmul.f32 %v82, 1.442695
    %v105 = vpow.pop %v104
    %v106 = vmul.f32 %v83, 1.442695
    %v107 = vpow.pop %v106
    %v108 = vmul.f32 %v84, 1.442695
    %v109 = vpow.pop %v108
    %v110 = vmul.f32 %v85, 1.442695
    %v111 = vpow.pop %v110
    %v112 = vmul.f32 %v86, 1.442695
    %v113 = vpow.pop %v112
    %v114 = vmul.f32 %v87, 1.442695
    %v115 = vpow.pop %v114
    %v116 = vmul.f32 %v88, 1.442695
    %v117 = vpow.pop %v116
    %v118 = vmul.f32 %v89, 1.442695
    %v119 = vpow.pop %v118
    %v120 = vmul.f32 %v90, 1.442695
    %v121 = vpow.pop %v120
    %v122 = vmul.f32 %v91, 1.442695
    %v123 = vpow.pop %v122
    %v124 = vadd.f32 %v93, 1.0
    %v125 = vadd.f32 %v95, 1.0
    %v126 = vadd.f32 %v97, 1.0
    %v127 = vadd.f32 %v99, 1.0
    %v128 = vadd.f32 %v101, 1.0
    %v129 = vadd.f32 %v103, 1.0
    %v130 = vadd.f32 %v105, 1.0
    %v131 = vadd.f32 %v107, 1.0
    %v132 = vadd.f32 %v109, 1.0
    %v133 = vadd.f32 %v111, 1.0
    %v134 = vadd.f32 %v113, 1.0
    %v135 = vadd.f32 %v115, 1.0
    %v136 = vadd.f32 %v117, 1.0
    %v137 = vadd.f32 %v119, 1.0
    %v138 = vadd.f32 %v121, 1.0
    %v139 = vadd.f32 %v123, 1.0
    %v140 = vrcp.pop %v124
    %v141 = vmul.f32 1.0, %v140
    %v142 = vrcp.pop %v125
    %v143 = vmul.f32 1.0, %v142
    %v144 = vrcp.pop %v126
    %v145 = vmul.f32 1.0, %v144
    %v146 = vrcp.pop %v127
    %v147 = vmul.f32 1.0, %v146
    %v148 = vrcp.pop %v128
    %v149 = vmul.f32 1.0, %v148
    %v150 = vrcp.pop %v129
    %v151 = vmul.f32 1.0, %v150
    %v152 = vrcp.pop %v130
    %v153 = vmul.f32 1.0, %v152
    %v154 = vrcp.pop %v131
    %v155 = vmul.f32 1.0, %v154
    %v156 = vrcp.pop %v132
    %v157 = vmul.f32 1.0, %v156
    %v158 = vrcp.pop %v133
    %v159 = vmul.f32 1.0, %v158
    %v160 = vrcp.pop %v134
    %v161 = vmul.f32 1.0, %v160
    %v162 = vrcp.pop %v135
    %v163 = vmul.f32 1.0, %v162
    %v164 = vrcp.pop %v136
    %v165 = vmul.f32 1.0, %v164
    %v166 = vrcp.pop %v137
    %v167 = vmul.f32 1.0, %v166
    %v168 = vrcp.pop %v138
    %v169 = vmul.f32 1.0, %v168
    %v170 = vrcp.pop %v139
    %v171 = vmul.f32 1.0, %v170
    %v172 = vsub.f32 1.0, %v141
    %v173 = vsub.f32 1.0, %v143
    %v174 = vsub.f32 1.0, %v145
    %v175 = vsub.f32 1.0, %v147
    %v176 = vsub.f32 1.0, %v149
    %v177 = vsub.f32 1.0, %v151
    %v178 = vsub.f32 1.0, %v153
    %v179 = vsub.f32 1.0, %v155
    %v180 = vsub.f32 1.0, %v157
    %v181 = vsub.f32 1.0, %v159
    %v182 = vsub.f32 1.0, %v161
    %v183 = vsub.f32 1.0, %v163
    %v184 = vsub.f32 1.0, %v165
    %v185 = vsub.f32 1.0, %v167
    %v186 = vsub.f32 1.0, %v169
    %v187 = vsub.f32 1.0, %v171
    %v188 = vadd.f32 %v172, 0.05
    %v189 = vadd.f32 %v173, 0.05
    %v190 = vadd.f32 %v174, 0.05
    %v191 = vadd.f32 %v175, 0.05
    %v192 = vadd.f32 %v176, 0.05
    %v193 = vadd.f32 %v177, 0.05
    %v194 = vadd.f32 %v178, 0.05
    %v195 = vadd.f32 %v179, 0.05
    %v196 = vadd.f32 %v180, 0.05
    %v197 = vadd.f32 %v181, 0.05
    %v198 = vadd.f32 %v182, 0.05
    %v199 = vadd.f32 %v183, 0.05
    %v200 = vadd.f32 %v184, 0.05
    %v201 = vadd.f32 %v185, 0.05
    %v202 = vadd.f32 %v186, 0.05
    %v203 = vadd.f32 %v187, 0.05
    %v204 = vmin.f32 %v188, 1.0
    %v205 = vmin.f32 %v189, 1.0
    %v206 = vmin.f32 %v190, 1.0
    %v207 = vmin.f32 %v191, 1.0
    %v208 = vmin.f32 %v192, 1.0
    %v209 = vmin.f32 %v193, 1.0
    %v210 = vmin.f32 %v194, 1.0
    %v211 = vmin.f32 %v195, 1.0
    %v212 = vmin.f32 %v196, 1.0
    %v213 = vmin.f32 %v197, 1.0
    %v214 = vmin.f32 %v198, 1.0
    %v215 = vmin.f32 %v199, 1.0
    %v216 = vmin.f32 %v200, 1.0
    %v217 = vmin.f32 %v201, 1.0
    %v218 = vmin.f32 %v202, 1.0
    %v219 = vmin.f32 %v203, 1.0
    %v220 = vld [vmem:[#allocation6] sm:$0xff]
    %v221 = vld [vmem:[#allocation6 + $0x8] sm:$0xff]
    %v222 = vld [vmem:[#allocation6 + $0x10] sm:$0xff]
    %v223 = vld [vmem:[#allocation6 + $0x18] sm:$0xff]
    %v224 = vld [vmem:[#allocation6 + $0x20] sm:$0xff]
    %v225 = vld [vmem:[#allocation6 + $0x28] sm:$0xff]
    %v226 = vld [vmem:[#allocation6 + $0x30] sm:$0xff]
    %v227 = vld [vmem:[#allocation6 + $0x38] sm:$0xff]
    %v228 = vld [vmem:[#allocation6 + $0x40] sm:$0xff]
    %v229 = vld [vmem:[#allocation6 + $0x48] sm:$0xff]
    %v230 = vld [vmem:[#allocation6 + $0x50] sm:$0xff]
    %v231 = vld [vmem:[#allocation6 + $0x58] sm:$0xff]
    %v232 = vld [vmem:[#allocation6 + $0x60] sm:$0xff]
    %v233 = vld [vmem:[#allocation6 + $0x68] sm:$0xff]
    %v234 = vld [vmem:[#allocation6 + $0x70] sm:$0xff]
    %v235 = vld [vmem:[#allocation6 + $0x78] sm:$0xff]
    %v236 = vmax.f32 %v141, 1e-08
    %v237 = vmax.f32 %v143, 1e-08
    %v238 = vmax.f32 %v145, 1e-08
    %v239 = vmax.f32 %v147, 1e-08
    %v240 = vmax.f32 %v149, 1e-08
    %v241 = vmax.f32 %v151, 1e-08
    %v242 = vmax.f32 %v153, 1e-08
    %v243 = vmax.f32 %v155, 1e-08
    %v244 = vmax.f32 %v157, 1e-08
    %v245 = vmax.f32 %v159, 1e-08
    %v246 = vmax.f32 %v161, 1e-08
    %v247 = vmax.f32 %v163, 1e-08
    %v248 = vmax.f32 %v165, 1e-08
    %v249 = vmax.f32 %v167, 1e-08
    %v250 = vmax.f32 %v169, 1e-08
    %v251 = vmax.f32 %v171, 1e-08
    %v252 = vlog2.pop %v236
    %v253 = vmul.f32 %v252, 0.6931472
    %v254 = vlog2.pop %v237
    %v255 = vmul.f32 %v254, 0.6931472
    %v256 = vlog2.pop %v238
    %v257 = vmul.f32 %v256, 0.6931472
    %v258 = vlog2.pop %v239
    %v259 = vmul.f32 %v258, 0.6931472
    %v260 = vlog2.pop %v240
    %v261 = vmul.f32 %v260, 0.6931472
    %v262 = vlog2.pop %v241
    %v263 = vmul.f32 %v262, 0.6931472
    %v264 = vlog2.pop %v242
    %v265 = vmul.f32 %v264, 0.6931472
    %v266 = vlog2.pop %v243
    %v267 = vmul.f32 %v266, 0.6931472
    %v268 = vlog2.pop %v244
    %v269 = vmul.f32 %v268, 0.6931472
    %v270 = vlog2.pop %v245
    %v271 = vmul.f32 %v270, 0.6931472
    %v272 = vlog2.pop %v246
    %v273 = vmul.f32 %v272, 0.6931472
    %v274 = vlog2.pop %v247
    %v275 = vmul.f32 %v274, 0.6931472
    %v276 = vlog2.pop %v248
    %v277 = vmul.f32 %v276, 0.6931472
    %v278 = vlog2.pop %v249
    %v279 = vmul.f32 %v278, 0.6931472
    %v280 = vlog2.pop %v250
    %v281 = vmul.f32 %v280, 0.6931472
    %v282 = vlog2.pop %v251
    %v283 = vmul.f32 %v282, 0.6931472
    %v284 = vmul.f32 %v220, %v253
    %v285 = vmul.f32 %v221, %v255
    %v286 = vmul.f32 %v222, %v257
    %v287 = vmul.f32 %v223, %v259
    %v288 = vmul.f32 %v224, %v261
    %v289 = vmul.f32 %v225, %v263
    %v290 = vmul.f32 %v226, %v265
    %v291 = vmul.f32 %v227, %v267
    %v292 = vmul.f32 %v228, %v269
    %v293 = vmul.f32 %v229, %v271
    %v294 = vmul.f32 %v230, %v273
    %v295 = vmul.f32 %v231, %v275
    %v296 = vmul.f32 %v232, %v277
    %v297 = vmul.f32 %v233, %v279
    %v298 = vmul.f32 %v234, %v281
    %v299 = vmul.f32 %v235, %v283
    %v300 = vsub.f32 1.0, %v220
    %v301 = vsub.f32 1.0, %v221
    %v302 = vsub.f32 1.0, %v222
    %v303 = vsub.f32 1.0, %v223
    %v304 = vsub.f32 1.0, %v224
    %v305 = vsub.f32 1.0, %v225
    %v306 = vsub.f32 1.0, %v226
    %v307 = vsub.f32 1.0, %v227
    %v308 = vsub.f32 1.0, %v228
    %v309 = vsub.f32 1.0, %v229
    %v310 = vsub.f32 1.0, %v230
    %v311 = vsub.f32 1.0, %v231
    %v312 = vsub.f32 1.0, %v232
    %v313 = vsub.f32 1.0, %v233
    %v314 = vsub.f32 1.0, %v234
    %v315 = vsub.f32 1.0, %v235
    %v316 = vmax.f32 %v204, 1e-08
    %v317 = vmax.f32 %v205, 1e-08
    %v318 = vmax.f32 %v206, 1e-08
    %v319 = vmax.f32 %v207, 1e-08
    %v320 = vmax.f32 %v208, 1e-08
    %v321 = vmax.f32 %v209, 1e-08
    %v322 = vmax.f32 %v210, 1e-08
    %v323 = vmax.f32 %v211, 1e-08
    %v324 = vmax.f32 %v212, 1e-08
    %v325 = vmax.f32 %v213, 1e-08
    %v326 = vmax.f32 %v214, 1e-08
    %v327 = vmax.f32 %v215, 1e-08
    %v328 = vmax.f32 %v216, 1e-08
    %v329 = vmax.f32 %v217, 1e-08
    %v330 = vmax.f32 %v218, 1e-08
    %v331 = vmax.f32 %v219, 1e-08
    %v332 = vlog2.pop %v316
    %v333 = vmul.f32 %v332, 0.6931472
    %v334 = vlog2.pop %v317
    %v335 = vmul.f32 %v334, 0.6931472
    %v336 = vlog2.pop %v318
    %v337 = vmul.f32 %v336, 0.6931472
    %v338 = vlog2.pop %v319
    %v339 = vmul.f32 %v338, 0.6931472
    %v340 = vlog2.pop %v320
    %v341 = vmul.f32 %v340, 0.6931472
    %v342 = vlog2.pop %v321
    %v343 = vmul.f32 %v342, 0.6931472
    %v344 = vlog2.pop %v322
    %v345 = vmul.f32 %v344, 0.6931472
    %v346 = vlog2.pop %v323
    %v347 = vmul.f32 %v346, 0.6931472
    %v348 = vlog2.pop %v324
    %v349 = vmul.f32 %v348, 0.6931472
    %v350 = vlog2.pop %v325
    %v351 = vmul.f32 %v350, 0.6931472
    %v352 = vlog2.pop %v326
    %v353 = vmul.f32 %v352, 0.6931472
    %v354 = vlog2.pop %v327
    %v355 = vmul.f32 %v354, 0.6931472
    %v356 = vlog2.pop %v328
    %v357 = vmul.f32 %v356, 0.6931472
    %v358 = vlog2.pop %v329
    %v359 = vmul.f32 %v358, 0.6931472
    %v360 = vlog2.pop %v330
    %v361 = vmul.f32 %v360, 0.6931472
    %v362 = vlog2.pop %v331
    %v363 = vmul.f32 %v362, 0.6931472
    %v364 = vmul.f32 %v300, %v333
    %v365 = vmul.f32 %v301, %v335
    %v366 = vmul.f32 %v302, %v337
    %v367 = vmul.f32 %v303, %v339
    %v368 = vmul.f32 %v304, %v341
    %v369 = vmul.f32 %v305, %v343
    %v370 = vmul.f32 %v306, %v345
    %v371 = vmul.f32 %v307, %v347
    %v372 = vmul.f32 %v308, %v349
    %v373 = vmul.f32 %v309, %v351
    %v374 = vmul.f32 %v310, %v353
    %v375 = vmul.f32 %v311, %v355
    %v376 = vmul.f32 %v312, %v357
    %v377 = vmul.f32 %v313, %v359
    %v378 = vmul.f32 %v314, %v361
    %v379 = vmul.f32 %v315, %v363
    %v380 = vadd.f32 %v284, %v364
    %v381 = vadd.f32 %v285, %v365
    %v382 = vadd.f32 %v286, %v366
    %v383 = vadd.f32 %v287, %v367
    %v384 = vadd.f32 %v288, %v368
    %v385 = vadd.f32 %v289, %v369
    %v386 = vadd.f32 %v290, %v370
    %v387 = vadd.f32 %v291, %v371
    %v388 = vadd.f32 %v292, %v372
    %v389 = vadd.f32 %v293, %v373
    %v390 = vadd.f32 %v294, %v374
    %v391 = vadd.f32 %v295, %v375
    %v392 = vadd.f32 %v296, %v376
    %v393 = vadd.f32 %v297, %v377
    %v394 = vadd.f32 %v298, %v378
    %v395 = vadd.f32 %v299, %v379
    %v396 = vmul.f32 %v141, %v220
    %v397 = vmul.f32 %v143, %v221
    %v398 = vmul.f32 %v145, %v222
    %v399 = vmul.f32 %v147, %v223
    %v400 = vmul.f32 %v149, %v224
    %v401 = vmul.f32 %v151, %v225
    %v402 = vmul.f32 %v153, %v226
    %v403 = vmul.f32 %v155, %v227
    %v404 = vmul.f32 %v157, %v228
    %v405 = vmul.f32 %v159, %v229
    %v406 = vmul.f32 %v161, %v230
    %v407 = vmul.f32 %v163, %v231
    %v408 = vmul.f32 %v165, %v232
    %v409 = vmul.f32 %v167, %v233
    %v410 = vmul.f32 %v169, %v234
    %v411 = vmul.f32 %v171, %v235
    %v412 = vmul.f32 %v204, %v300
    %v413 = vmul.f32 %v205, %v301
    %v414 = vmul.f32 %v206, %v302
    %v415 = vmul.f32 %v207, %v303
    %v416 = vmul.f32 %v208, %v304
    %v417 = vmul.f32 %v209, %v305
    %v418 = vmul.f32 %v210, %v306
    %v419 = vmul.f32 %v211, %v307
    %v420 = vmul.f32 %v212, %v308
    %v421 = vmul.f32 %v213, %v309
    %v422 = vmul.f32 %v214, %v310
    %v423 = vmul.f32 %v215, %v311
    %v424 = vmul.f32 %v216, %v312
    %v425 = vmul.f32 %v217, %v313
    %v426 = vmul.f32 %v218, %v314
    %v427 = vmul.f32 %v219, %v315
    %v428 = vadd.f32 %v396, %v412
    %v429 = vadd.f32 %v397, %v413
    %v430 = vadd.f32 %v398, %v414
    %v431 = vadd.f32 %v399, %v415
    %v432 = vadd.f32 %v400, %v416
    %v433 = vadd.f32 %v401, %v417
    %v434 = vadd.f32 %v402, %v418
    %v435 = vadd.f32 %v403, %v419
    %v436 = vadd.f32 %v404, %v420
    %v437 = vadd.f32 %v405, %v421
    %v438 = vadd.f32 %v406, %v422
    %v439 = vadd.f32 %v407, %v423
    %v440 = vadd.f32 %v408, %v424
    %v441 = vadd.f32 %v409, %v425
    %v442 = vadd.f32 %v410, %v426
    %v443 = vadd.f32 %v411, %v427
    %v444 = vmul.f32 %v300, 4.0
    %v445 = vmul.f32 %v301, 4.0
    %v446 = vmul.f32 %v302, 4.0
    %v447 = vmul.f32 %v303, 4.0
    %v448 = vmul.f32 %v304, 4.0
    %v449 = vmul.f32 %v305, 4.0
    %v450 = vmul.f32 %v306, 4.0
    %v451 = vmul.f32 %v307, 4.0
    %v452 = vmul.f32 %v308, 4.0
    %v453 = vmul.f32 %v309, 4.0
    %v454 = vmul.f32 %v310, 4.0
    %v455 = vmul.f32 %v311, 4.0
    %v456 = vmul.f32 %v312, 4.0
    %v457 = vmul.f32 %v313, 4.0
    %v458 = vmul.f32 %v314, 4.0
    %v459 = vmul.f32 %v315, 4.0
    %v460 = vadd.f32 %v220, %v444
    %v461 = vadd.f32 %v221, %v445
    %v462 = vadd.f32 %v222, %v446
    %v463 = vadd.f32 %v223, %v447
    %v464 = vadd.f32 %v224, %v448
    %v465 = vadd.f32 %v225, %v449
    %v466 = vadd.f32 %v226, %v450
    %v467 = vadd.f32 %v227, %v451
    %v468 = vadd.f32 %v228, %v452
    %v469 = vadd.f32 %v229, %v453
    %v470 = vadd.f32 %v230, %v454
    %v471 = vadd.f32 %v231, %v455
    %v472 = vadd.f32 %v232, %v456
    %v473 = vadd.f32 %v233, %v457
    %v474 = vadd.f32 %v234, %v458
    %v475 = vadd.f32 %v235, %v459
    %v476 = vsub.f32 1.0, %v428
    %v477 = vsub.f32 1.0, %v429
    %v478 = vsub.f32 1.0, %v430
    %v479 = vsub.f32 1.0, %v431
    %v480 = vsub.f32 1.0, %v432
    %v481 = vsub.f32 1.0, %v433
    %v482 = vsub.f32 1.0, %v434
    %v483 = vsub.f32 1.0, %v435
    %v484 = vsub.f32 1.0, %v436
    %v485 = vsub.f32 1.0, %v437
    %v486 = vsub.f32 1.0, %v438
    %v487 = vsub.f32 1.0, %v439
    %v488 = vsub.f32 1.0, %v440
    %v489 = vsub.f32 1.0, %v441
    %v490 = vsub.f32 1.0, %v442
    %v491 = vsub.f32 1.0, %v443
    %v492 = vmax.f32 %v476, 1e-38
    %v493 = vmax.f32 %v477, 1e-38
    %v494 = vmax.f32 %v478, 1e-38
    %v495 = vmax.f32 %v479, 1e-38
    %v496 = vmax.f32 %v480, 1e-38
    %v497 = vmax.f32 %v481, 1e-38
    %v498 = vmax.f32 %v482, 1e-38
    %v499 = vmax.f32 %v483, 1e-38
    %v500 = vmax.f32 %v484, 1e-38
    %v501 = vmax.f32 %v485, 1e-38
    %v502 = vmax.f32 %v486, 1e-38
    %v503 = vmax.f32 %v487, 1e-38
    %v504 = vmax.f32 %v488, 1e-38
    %v505 = vmax.f32 %v489, 1e-38
    %v506 = vmax.f32 %v490, 1e-38
    %v507 = vmax.f32 %v491, 1e-38
    %v508 = vlog2.pop %v492
    %v509 = vmul.f32 %v508, 0.6931472
    %v510 = vlog2.pop %v493
    %v511 = vmul.f32 %v510, 0.6931472
    %v512 = vlog2.pop %v494
    %v513 = vmul.f32 %v512, 0.6931472
    %v514 = vlog2.pop %v495
    %v515 = vmul.f32 %v514, 0.6931472
    %v516 = vlog2.pop %v496
    %v517 = vmul.f32 %v516, 0.6931472
    %v518 = vlog2.pop %v497
    %v519 = vmul.f32 %v518, 0.6931472
    %v520 = vlog2.pop %v498
    %v521 = vmul.f32 %v520, 0.6931472
    %v522 = vlog2.pop %v499
    %v523 = vmul.f32 %v522, 0.6931472
    %v524 = vlog2.pop %v500
    %v525 = vmul.f32 %v524, 0.6931472
    %v526 = vlog2.pop %v501
    %v527 = vmul.f32 %v526, 0.6931472
    %v528 = vlog2.pop %v502
    %v529 = vmul.f32 %v528, 0.6931472
    %v530 = vlog2.pop %v503
    %v531 = vmul.f32 %v530, 0.6931472
    %v532 = vlog2.pop %v504
    %v533 = vmul.f32 %v532, 0.6931472
    %v534 = vlog2.pop %v505
    %v535 = vmul.f32 %v534, 0.6931472
    %v536 = vlog2.pop %v506
    %v537 = vmul.f32 %v536, 0.6931472
    %v538 = vlog2.pop %v507
    %v539 = vmul.f32 %v538, 0.6931472
    %v540 = vmul.f32 %v460, %v509
    %v541 = vmul.f32 %v461, %v511
    %v542 = vmul.f32 %v462, %v513
    %v543 = vmul.f32 %v463, %v515
    %v544 = vmul.f32 %v464, %v517
    %v545 = vmul.f32 %v465, %v519
    %v546 = vmul.f32 %v466, %v521
    %v547 = vmul.f32 %v467, %v523
    %v548 = vmul.f32 %v468, %v525
    %v549 = vmul.f32 %v469, %v527
    %v550 = vmul.f32 %v470, %v529
    %v551 = vmul.f32 %v471, %v531
    %v552 = vmul.f32 %v472, %v533
    %v553 = vmul.f32 %v473, %v535
    %v554 = vmul.f32 %v474, %v537
    %v555 = vmul.f32 %v475, %v539
    %v556 = vmul.f32 %v540, 1.442695
    %v557 = vpow.pop %v556
    %v558 = vmul.f32 %v541, 1.442695
    %v559 = vpow.pop %v558
    %v560 = vmul.f32 %v542, 1.442695
    %v561 = vpow.pop %v560
    %v562 = vmul.f32 %v543, 1.442695
    %v563 = vpow.pop %v562
    %v564 = vmul.f32 %v544, 1.442695
    %v565 = vpow.pop %v564
    %v566 = vmul.f32 %v545, 1.442695
    %v567 = vpow.pop %v566
    %v568 = vmul.f32 %v546, 1.442695
    %v569 = vpow.pop %v568
    %v570 = vmul.f32 %v547, 1.442695
    %v571 = vpow.pop %v570
    %v572 = vmul.f32 %v548, 1.442695
    %v573 = vpow.pop %v572
    %v574 = vmul.f32 %v549, 1.442695
    %v575 = vpow.pop %v574
    %v576 = vmul.f32 %v550, 1.442695
    %v577 = vpow.pop %v576
    %v578 = vmul.f32 %v551, 1.442695
    %v579 = vpow.pop %v578
    %v580 = vmul.f32 %v552, 1.442695
    %v581 = vpow.pop %v580
    %v582 = vmul.f32 %v553, 1.442695
    %v583 = vpow.pop %v582
    %v584 = vmul.f32 %v554, 1.442695
    %v585 = vpow.pop %v584
    %v586 = vmul.f32 %v555, 1.442695
    %v587 = vpow.pop %v586
    %v588 = vmul.f32 %v380, %v557
    %v589 = vmul.f32 %v381, %v559
    %v590 = vmul.f32 %v382, %v561
    %v591 = vmul.f32 %v383, %v563
    %v592 = vmul.f32 %v384, %v565
    %v593 = vmul.f32 %v385, %v567
    %v594 = vmul.f32 %v386, %v569
    %v595 = vmul.f32 %v387, %v571
    %v596 = vmul.f32 %v388, %v573
    %v597 = vmul.f32 %v389, %v575
    %v598 = vmul.f32 %v390, %v577
    %v599 = vmul.f32 %v391, %v579
    %v600 = vmul.f32 %v392, %v581
    %v601 = vmul.f32 %v393, %v583
    %v602 = vmul.f32 %v394, %v585
    %v603 = vmul.f32 %v395, %v587
    %v604 = vadd.f32 %v588, %v590
    %v605 = vadd.f32 %v604, %v592
    %v606 = vadd.f32 %v605, %v594
    %v607 = vadd.f32 %v606, %v596
    %v608 = vadd.f32 %v607, %v598
    %v609 = vadd.f32 %v608, %v600
    %v610 = vadd.f32 %v609, %v602
    %v611 = vadd.f32 %v589, %v591
    %v612 = vadd.f32 %v611, %v593
    %v613 = vadd.f32 %v612, %v595
    %v614 = vadd.f32 %v613, %v597
    %v615 = vadd.f32 %v614, %v599
    %v616 = vadd.f32 %v615, %v601
    %v617 = vadd.f32 %v616, %v603
    %v618 = vld [vmem:[#allocation2] sm:$0xff]
    %v619 = vld [vmem:[#allocation2 + $0x8] sm:$0xff]
    %v620 = vadd.f32 %v618, %v610
    %v621 = vadd.f32 %v619, %v617
    %622 = vst [vmem:[#allocation2] sm:$0xff] %v620
    %623 = vst [vmem:[#allocation2 + $0x8] sm:$0xff] %v621
    // Predicated region
    $region22: #{tpu_custom_call.1} parent=1 // pred_check
      %p624 = pneg %p54
    $region23: #{tpu_custom_call.1} parent=1 // pred_check_branch
      %626 = sbr.rel (%p624) target = $region25
    $region24: #{tpu_custom_call.1} parent=1 // pred_region
      %v627 = vld [vmem:[#allocation2] sm:$0xff]
      %v628 = vld [vmem:[#allocation2 + $0x8] sm:$0xff]
      %v629 = vadd.f32 %v627, %v628
      %630 = vadd.xlane.f32.xlu0 %v629
      %v631 = vpop.xlane.xlu0 %630
      %v632 = vrot.slane %v631, 4
      %v633 = vadd.f32 %v631, %v632
      %v634 = vrot.slane %v633, 2
      %v635 = vadd.f32 %v633, %v634
      %v636 = vrot.slane %v635, 1
      %v637 = vadd.f32 %v635, %v636
      %s638 = vtos %v637
      %s639 = ssub.f32 0.0, %s638
      %s640 = smul.f32 %s639, 6.1035156e-05
      %v641 = vstv %s640
      %vm642 = vcmask 0
      %643 = vst.msk [vmem:[#allocation8] sm:$0x1] %vm642, %v641
    $region25: #{tpu_custom_call.1} parent=1 // pred_fallthru
      _
    // Predicated region
    $region26: #{tpu_custom_call.1} parent=1 // pred_check
      _
    $region27: #{tpu_custom_call.1} parent=1 // pred_check_branch
      %645 = sbr.rel (0) target = $region29
    $region28: #{tpu_custom_call.1} parent=1 // pred_region
      %s647 = ssub.s32 16, 16
      %648 = vsyncadd [#allocation5], %s647
      %s650 = sshll.u32 [#allocation8], 4
      %s651 = int_to_ptr.vmem [resolvable:$true] %s650
      %653 = dma.vmem_to_hbm [thread:$0]  %s651, 16, %s2, [#allocation5]
    $region29: #{tpu_custom_call.1} parent=1 // pred_fallthru
      _
    // Predicated region
    $region30: #{tpu_custom_call.1} parent=1 // pred_check
      _
    $region31: #{tpu_custom_call.1} parent=1 // pred_check_branch
      %655 = sbr.rel (0) target = $region33
    $region32: #{tpu_custom_call.1} parent=1 // pred_region
      %656 = dma.done [#allocation5], 16
    $region33: #{tpu_custom_call.1} parent=1 // pred_fallthru
      _
    %657 = vsyncpa [#allocation4], 1
    %658 = vsyncpa [#allocation7], 1
    %659 = vsyncpa [#allocation5], 1

</llo_original>
